<compile_context>
chip_gen: v5e
topology: v5e:2x2
jax: 0.10.0
libtpu: 0.0.40
codegen_flags: <defaults>
</compile_context>

<pallas_src>
import jax
import jax.numpy as jnp
from jax.experimental import pallas as pl
from jax.experimental.pallas import tpu as pltpu

_LANE = 128      # vreg lane width
_SUBLANE = 8     # f32 sublane count


def _round_up(n, m):
    return (n + m - 1) // m * m


def intent_net_kernel(x_ref, w1_ref, b1_ref, w2_ref, b2_ref, out_ref):
    # fc1: [tb, D_in] @ [D_in, Hp] with f32 accumulation on the MXU.
    h = jnp.dot(x_ref[...], w1_ref[...], preferred_element_type=jnp.float32)
    h = h + b1_ref[...]                    # broadcast (1, Hp) over batch (VPU)
    h = jnp.maximum(h, 0.0)                # ReLU (VPU)
    # fc2: [tb, Hp] @ [Hp, Dp] with f32 accumulation.
    o = jnp.dot(h.astype(w2_ref.dtype), w2_ref[...],
                preferred_element_type=jnp.float32)
    o = o + b2_ref[...]
    out_ref[...] = o.astype(out_ref.dtype)  # lane-dense store (Dp % 128 == 0)


def pack_params(w1, b1, w2, b2, *, matmul_dtype=None):
    """Pad hidden/output widths to a multiple of 128, once, outside the hot path.

    w1: [D_in, H], b1: [H], w2: [H, D_out], b2: [D_out] — already transposed
    relative to nn.Linear's [out, in] storage, so the kernel computes x @ W + b
    (mathematically identical to x @ W.T + b with PyTorch's layout).
    Zero-padding is exact: padded hidden columns give ReLU(0 + 0) = 0 and the
    corresponding padded w2 rows are zero, so they contribute nothing.
    """
    H = w1.shape[1]
    D_out = w2.shape[1]
    Hp = _round_up(H, _LANE)
    Dp = _round_up(D_out, _LANE)

    w1p = jnp.pad(w1, ((0, 0), (0, Hp - H)))
    b1p = jnp.pad(b1.reshape(1, -1), ((0, 0), (0, Hp - H)))
    w2p = jnp.pad(w2, ((0, Hp - H), (0, Dp - D_out)))
    b2p = jnp.pad(b2.reshape(1, -1), ((0, 0), (0, Dp - D_out)))

    if matmul_dtype is not None:           # e.g. jnp.bfloat16 on v6e/v7x
        w1p = w1p.astype(matmul_dtype)
        w2p = w2p.astype(matmul_dtype)
    return w1p, b1p, w2p, b2p, D_out


def intent_net_forward(x, packed, *, tile_b=512, matmul_dtype=None):
    """x: [B, D_in] f32.  `packed` = pack_params(...).  Returns [B, D_out] f32."""
    w1, b1, w2, b2, d_out = packed
    B, d_in = x.shape
    Dp = w2.shape[1]

    if matmul_dtype is not None:
        x = x.astype(matmul_dtype)

    if B <= tile_b:
        # Small batch: single invocation, full-array blocks in VMEM, no grid —
        # avoids the ~0.35 µs/step pipeline machinery of a degenerate grid.
        Bp = _round_up(B, _SUBLANE)
        xp = jnp.pad(x, ((0, Bp - B), (0, 0))) if Bp != B else x
        out = pl.pallas_call(
            intent_net_kernel,
            out_shape=jax.ShapeDtypeStruct((Bp, Dp), jnp.float32),
        )(xp, w1, b1, w2, b2)
    else:
        # Large batch: tile the batch axis; weights/biases stay VMEM-resident
        # (index_map -> (0, 0)), batch-tile axis marked "parallel" so v7x's two
        # TensorCores split it.  Double-buffered (tile_b x d_in) f32 x/out tiles
        # at tile_b=512, d_in<=128 fit comfortably in v7x's 64 MiB VMEM.
        n_tiles = pl.cdiv(B, tile_b)
        Bp = n_tiles * tile_b
        xp = jnp.pad(x, ((0, Bp - B), (0, 0))) if Bp != B else x
        out = pl.pallas_call(
            intent_net_kernel,
            out_shape=jax.ShapeDtypeStruct((Bp, Dp), jnp.float32),
            grid=(n_tiles,),
            in_specs=[
                pl.BlockSpec((tile_b, d_in), lambda i: (i, 0)),
                pl.BlockSpec(w1.shape, lambda i: (0, 0)),
                pl.BlockSpec(b1.shape, lambda i: (0, 0)),
                pl.BlockSpec(w2.shape, lambda i: (0, 0)),
                pl.BlockSpec(b2.shape, lambda i: (0, 0)),
            ],
            out_specs=pl.BlockSpec((tile_b, Dp), lambda i: (i, 0)),
            compiler_params=pltpu.CompilerParams(
                dimension_semantics=("parallel",)),
        )(xp, w1, b1, w2, b2)

    # Slice away batch/lane padding outside the kernel (cheap XLA slice).
    return out[:B, :d_out]


def reference_forward(x, w1, b1, w2, b2):
    h = jnp.maximum(x @ w1 + b1[None, :], 0.0)
    return h @ w2 + b2[None, :]


if __name__ == "__main__":
    # Shapes consistent with IntentNet(input_dim, 32, output_dim) in the script.
    batch = 8
    input_dim = 64      # bag-of-words vocab size
    hidden_dim = 32
    output_dim = 8      # number of intent labels

    key = jax.random.PRNGKey(0)
    kx, k1, kb1, k2, kb2 = jax.random.split(key, 5)

    x = jax.random.normal(kx, (batch, input_dim), dtype=jnp.float32)

    # PyTorch nn.Linear default init scale: U(-1/sqrt(fan_in), 1/sqrt(fan_in)).
    bound1 = 1.0 / jnp.sqrt(jnp.float32(input_dim))
    bound2 = 1.0 / jnp.sqrt(jnp.float32(hidden_dim))
    w1 = jax.random.uniform(k1, (input_dim, hidden_dim), jnp.float32, -bound1, bound1)
    b1 = jax.random.uniform(kb1, (hidden_dim,), jnp.float32, -bound1, bound1)
    w2 = jax.random.uniform(k2, (hidden_dim, output_dim), jnp.float32, -bound2, bound2)
    b2 = jax.random.uniform(kb2, (output_dim,), jnp.float32, -bound2, bound2)

    # Pad/pack parameters once (lane-dense widths), keep f32 matmul operands so
    # the kernel matches nn.Linear numerics bit-for-tolerance.
    packed = pack_params(w1, b1, w2, b2)

    out = intent_net_forward(x, packed)
    out = jax.block_until_ready(out)

    ref = reference_forward(x, w1, b1, w2, b2)
    assert out.shape == (batch, output_dim)
    assert jnp.allclose(out, ref, atol=1e-5, rtol=1e-5)

    print("KERNEL_OK")
</pallas_src>

<mosaic_0001>
module attributes {stable_mosaic.version = 11 : i64} {
  func.func @intent_net_kernel(%arg0: memref<8x64xf32, #tpu.memory_space<vmem>>, %arg1: memref<64x128xf32, #tpu.memory_space<vmem>>, %arg2: memref<1x128xf32, #tpu.memory_space<vmem>>, %arg3: memref<128x128xf32, #tpu.memory_space<vmem>>, %arg4: memref<1x128xf32, #tpu.memory_space<vmem>>, %arg5: memref<8x128xf32, #tpu.memory_space<vmem>>) attributes {dimension_semantics = [], scalar_prefetch = 0 : i64, scratch_operands = 0 : i64, tpu.core_type = #tpu.core_type<tc>} {
    %c0 = arith.constant 0 : index
    %c0_0 = arith.constant 0 : index
    %0 = vector.load %arg0[%c0, %c0_0] : memref<8x64xf32, #tpu.memory_space<vmem>>, vector<8x64xf32>
    %c0_1 = arith.constant 0 : index
    %c0_2 = arith.constant 0 : index
    %1 = vector.load %arg1[%c0_1, %c0_2] : memref<64x128xf32, #tpu.memory_space<vmem>>, vector<64x128xf32>
    %cst = arith.constant dense<0.000000e+00> : vector<8x128xf32>
    %2 = tpu.matmul %0, %1, %cst {dimension_numbers = #tpu.dot_dimension_numbers<[1], [0], [0], [1], [0, 0, 1, 1], [], []>} : vector<8x64xf32>, vector<64x128xf32>, vector<8x128xf32> -> vector<8x128xf32>
    %c0_3 = arith.constant 0 : index
    %c0_4 = arith.constant 0 : index
    %3 = vector.load %arg2[%c0_3, %c0_4] : memref<1x128xf32, #tpu.memory_space<vmem>>, vector<1x128xf32>
    %4 = vector.broadcast %3 : vector<1x128xf32> to vector<8x128xf32>
    %5 = arith.addf %2, %4 : vector<8x128xf32>
    %cst_5 = arith.constant 0.000000e+00 : f32
    %6 = vector.broadcast %cst_5 : f32 to vector<8x128xf32>
    %7 = arith.maximumf %5, %6 : vector<8x128xf32>
    %c0_6 = arith.constant 0 : index
    %c0_7 = arith.constant 0 : index
    %8 = vector.load %arg3[%c0_6, %c0_7] : memref<128x128xf32, #tpu.memory_space<vmem>>, vector<128x128xf32>
    %cst_8 = arith.constant dense<0.000000e+00> : vector<8x128xf32>
    %9 = tpu.matmul %7, %8, %cst_8 {dimension_numbers = #tpu.dot_dimension_numbers<[1], [0], [0], [1], [0, 0, 1, 1], [], []>} : vector<8x128xf32>, vector<128x128xf32>, vector<8x128xf32> -> vector<8x128xf32>
    %c0_9 = arith.constant 0 : index
    %c0_10 = arith.constant 0 : index
    %10 = vector.load %arg4[%c0_9, %c0_10] : memref<1x128xf32, #tpu.memory_space<vmem>>, vector<1x128xf32>
    %11 = vector.broadcast %10 : vector<1x128xf32> to vector<8x128xf32>
    %12 = arith.addf %9, %11 : vector<8x128xf32>
    %c0_11 = arith.constant 0 : index
    %c0_12 = arith.constant 0 : index
    %13 = vector.load %arg5[%c0_11, %c0_12] : memref<8x128xf32, #tpu.memory_space<vmem>>, vector<8x128xf32>
    tpu.vector_store %arg5[%c0_11, %c0_12], %12 {strides = array<i32>} : memref<8x128xf32, #tpu.memory_space<vmem>>, vector<8x128xf32>,
    return
  }
}

</mosaic_0001>

<llo_original>
// kernel: tpu_custom_call.1
$region0: #{tpu_custom_call.1}
  #allocation0 [shape = 'u32[]', space=smem, size = 0x4, offset = 0x4, fixed_abs, tag = 'smem constant byte address 0x4 - core index']
  #allocation1 [shape = 'u32[72,128]{1,0:T(1,128)}', space=vmem, size = 0x9000, scoped, tag = 'internal scratch']
  %s0 = inlined_call_operand.hbm [shape: f32[8,64], index: 0, kind: input, shape index: {}]
  %s1 = inlined_call_operand.hbm [shape: f32[64,128], index: 1, kind: input, shape index: {}]
  %s2 = inlined_call_operand.vmem [shape: f32[1,128], index: 2, kind: input, shape index: {}]
  %s3 = inlined_call_operand.hbm [shape: f32[128,128], index: 3, kind: input, shape index: {}]
  %s4 = inlined_call_operand.vmem [shape: f32[1,128], index: 4, kind: input, shape index: {}]
  %s5 = inlined_call_operand.hbm [shape: f32[8,128], index: 5, kind: output, shape index: {}]
  %s6 = sld [smem:[#allocation0]]
  $region42: #{tpu_custom_call.1} parent=0
    _
  %s8 = ssub.s32 1, %s6
  %s9 = scalar_select 0, %s8, %s6
  $region1: #{tpu_custom_call.1} parent=0
    #allocation2 [shape = 'u8[4096]{0}', space=vmem, size = 0x1000, scoped, tag = 'input window, operand 0, single buffered']
    #allocation3 [shape = 's32[1]{0}', space=sflag, size = 0x4, scoped, tag = 'scoped memory for tpu_custom_call.1']
    #allocation4 [shape = 's32[1]{0}', space=sflag, size = 0x4, scoped, tag = 'scoped memory for tpu_custom_call.1']
    #allocation5 [shape = 'u8[32768]{0}', space=vmem, size = 0x8000, scoped, tag = 'input window, operand 1, single buffered']
    #allocation6 [shape = 's32[1]{0}', space=sflag, size = 0x4, scoped, tag = 'scoped memory for tpu_custom_call.1']
    #allocation7 [shape = 'u8[65536]{0}', space=vmem, size = 0x10000, scoped, tag = 'input window, operand 3, single buffered']
    #allocation8 [shape = 'u8[4096]{0}', space=vmem, size = 0x1000, scoped, tag = 'output window, operand 0, single buffered']
    %10 = vsyncpa [#allocation3], 0
    %11 = vsyncpa [#allocation6], 0
    %12 = vsyncpa [#allocation4], 0
    // Predicated region
    $region2: #{tpu_custom_call.1} parent=1 // pred_check
      _
    $region3: #{tpu_custom_call.1} parent=1 // pred_check_branch
      %14 = sbr.rel (0) target = $region5
    $region4: #{tpu_custom_call.1} parent=1 // pred_region
      %16 = vsyncadd [#allocation3], 0
      %s18 = sshll.u32 %s0, 4
      %s19 = int_to_ptr.hbm [resolvable:$true] %s18
      %s20 = sshll.u32 [#allocation2], 4
      %s21 = int_to_ptr.vmem [resolvable:$true] %s20
      %23 = dma.hbm_to_vmem [thread:$0]  %s19, 128, %s21, [#allocation3]
    $region5: #{tpu_custom_call.1} parent=1 // pred_fallthru
      _
    // Predicated region
    $region6: #{tpu_custom_call.1} parent=1 // pred_check
      _
    $region7: #{tpu_custom_call.1} parent=1 // pred_check_branch
      %25 = sbr.rel (0) target = $region9
    $region8: #{tpu_custom_call.1} parent=1 // pred_region
      %27 = vsyncadd [#allocation6], 0
      %s28 = sshll.u32 %s1, 4
      %s29 = int_to_ptr.hbm [resolvable:$true] %s28
      %s30 = sshll.u32 [#allocation5], 4
      %s31 = int_to_ptr.vmem [resolvable:$true] %s30
      %36 = dma.hbm_to_vmem [thread:$0]  %s29, 1024, %s31, [#allocation6], 128, 128, 8
    $region9: #{tpu_custom_call.1} parent=1 // pred_fallthru
      _
    // Predicated region
    $region10: #{tpu_custom_call.1} parent=1 // pred_check
      _
    $region11: #{tpu_custom_call.1} parent=1 // pred_check_branch
      %38 = sbr.rel (0) target = $region13
    $region12: #{tpu_custom_call.1} parent=1 // pred_region
      _
    $region13: #{tpu_custom_call.1} parent=1 // pred_fallthru
      _
    // Predicated region
    $region14: #{tpu_custom_call.1} parent=1 // pred_check
      _
    $region15: #{tpu_custom_call.1} parent=1 // pred_check_branch
      %40 = sbr.rel (0) target = $region17
    $region16: #{tpu_custom_call.1} parent=1 // pred_region
      %42 = vsyncadd [#allocation6], 0
      %s43 = sshll.u32 %s3, 4
      %s44 = int_to_ptr.hbm [resolvable:$true] %s43
      %s45 = sshll.u32 [#allocation7], 4
      %s46 = int_to_ptr.vmem [resolvable:$true] %s45
      %51 = dma.hbm_to_vmem [thread:$0]  %s44, 2048, %s46, [#allocation6], 128, 128, 8
    $region17: #{tpu_custom_call.1} parent=1 // pred_fallthru
      _
    // Predicated region
    $region18: #{tpu_custom_call.1} parent=1 // pred_check
      _
    $region19: #{tpu_custom_call.1} parent=1 // pred_check_branch
      %53 = sbr.rel (0) target = $region21
    $region20: #{tpu_custom_call.1} parent=1 // pred_region
      _
    $region21: #{tpu_custom_call.1} parent=1 // pred_fallthru
      _
    // Predicated region
    $region22: #{tpu_custom_call.1} parent=1 // pred_check
      _
    $region23: #{tpu_custom_call.1} parent=1 // pred_check_branch
      %55 = sbr.rel (0) target = $region25
    $region24: #{tpu_custom_call.1} parent=1 // pred_region
      %57 = dma.done [#allocation3], 128
    $region25: #{tpu_custom_call.1} parent=1 // pred_fallthru
      _
    // Predicated region
    $region26: #{tpu_custom_call.1} parent=1 // pred_check
      _
    $region27: #{tpu_custom_call.1} parent=1 // pred_check_branch
      %59 = sbr.rel (0) target = $region29
    $region28: #{tpu_custom_call.1} parent=1 // pred_region
      %61 = dma.done [#allocation6], 1024
    $region29: #{tpu_custom_call.1} parent=1 // pred_fallthru
      _
    // Predicated region
    $region30: #{tpu_custom_call.1} parent=1 // pred_check
      _
    $region31: #{tpu_custom_call.1} parent=1 // pred_check_branch
      %63 = sbr.rel (0) target = $region33
    $region32: #{tpu_custom_call.1} parent=1 // pred_region
      %65 = dma.done [#allocation6], 2048
    $region33: #{tpu_custom_call.1} parent=1 // pred_fallthru
      _
    %v66 = vld [vmem:[#allocation2] sm:$0xff]
    %v67 = vld [vmem:[#allocation5] sm:$0xff]
    %v68 = vld [vmem:[#allocation5 + $0x8] sm:$0xff]
    %v69 = vld [vmem:[#allocation5 + $0x10] sm:$0xff]
    %v70 = vld [vmem:[#allocation5 + $0x18] sm:$0xff]
    %v71 = vld [vmem:[#allocation5 + $0x20] sm:$0xff]
    %v72 = vld [vmem:[#allocation5 + $0x28] sm:$0xff]
    %v73 = vld [vmem:[#allocation5 + $0x30] sm:$0xff]
    %v74 = vld [vmem:[#allocation5 + $0x38] sm:$0xff]
    %v75 = vld [vmem:[%s2] sm:$0x1]
    %v77 = vperm.slane %v75, 0
    %vm79 = vcmask 523264
    %v81 = vsel %vm79, %v66, 0
    %83 = vmatpush.msra.mxu0 0.0
    %84 = vmatpush.msra.mxu0 0.0
    %85 = vmatpush.msra.mxu0 0.0
    %86 = vmatpush.msra.mxu0 0.0
    %87 = vmatpush.msra.mxu0 0.0
    %88 = vmatpush.msra.mxu0 0.0
    %89 = vmatpush.msra.mxu0 0.0
    %90 = vmatpush.msra.mxu0 0.0
    %91 = vmatpush.msra.mxu0 %v74
    %92 = vmatpush.msra.mxu0 %v73
    %93 = vmatpush.msra.mxu0 %v72
    %94 = vmatpush.msra.mxu0 %v71
    %95 = vmatpush.msra.mxu0 %v70
    %96 = vmatpush.msra.mxu0 %v69
    %97 = vmatpush.msra.mxu0 %v68
    %98 = vmatpush.msra.mxu0 %v67
    %99 = vmatmul.f32.gmra.mxu0 %v81
    %v100 = vpop.f32.mrf.mxu0
    %v101 = vadd.f32 %v77, %v100
    %102 = vdwg.mxu0
    %v103 = vmax.f32 %v101, 0.0
    %v104 = vld [vmem:[#allocation7] sm:$0xff]
    %v105 = vld [vmem:[#allocation7 + $0x8] sm:$0xff]
    %v106 = vld [vmem:[#allocation7 + $0x10] sm:$0xff]
    %v107 = vld [vmem:[#allocation7 + $0x18] sm:$0xff]
    %v108 = vld [vmem:[#allocation7 + $0x20] sm:$0xff]
    %v109 = vld [vmem:[#allocation7 + $0x28] sm:$0xff]
    %v110 = vld [vmem:[#allocation7 + $0x30] sm:$0xff]
    %v111 = vld [vmem:[#allocation7 + $0x38] sm:$0xff]
    %v112 = vld [vmem:[#allocation7 + $0x40] sm:$0xff]
    %v113 = vld [vmem:[#allocation7 + $0x48] sm:$0xff]
    %v114 = vld [vmem:[#allocation7 + $0x50] sm:$0xff]
    %v115 = vld [vmem:[#allocation7 + $0x58] sm:$0xff]
    %v116 = vld [vmem:[#allocation7 + $0x60] sm:$0xff]
    %v117 = vld [vmem:[#allocation7 + $0x68] sm:$0xff]
    %v118 = vld [vmem:[#allocation7 + $0x70] sm:$0xff]
    %v119 = vld [vmem:[#allocation7 + $0x78] sm:$0xff]
    %v120 = vld [vmem:[%s4] sm:$0x1]
    %v122 = vperm.slane %v120, 0
    %124 = vmatpush.msra.mxu0 %v119
    %125 = vmatpush.msra.mxu0 %v118
    %126 = vmatpush.msra.mxu0 %v117
    %127 = vmatpush.msra.mxu0 %v116
    %128 = vmatpush.msra.mxu0 %v115
    %129 = vmatpush.msra.mxu0 %v114
    %130 = vmatpush.msra.mxu0 %v113
    %131 = vmatpush.msra.mxu0 %v112
    %132 = vmatpush.msra.mxu0 %v111
    %133 = vmatpush.msra.mxu0 %v110
    %134 = vmatpush.msra.mxu0 %v109
    %135 = vmatpush.msra.mxu0 %v108
    %136 = vmatpush.msra.mxu0 %v107
    %137 = vmatpush.msra.mxu0 %v106
    %138 = vmatpush.msra.mxu0 %v105
    %139 = vmatpush.msra.mxu0 %v104
    %140 = vmatmul.f32.gmra.mxu0 %v103
    %v141 = vpop.f32.mrf.mxu0
    %v142 = vadd.f32 %v122, %v141
    %143 = vdwg.mxu0
    %144 = vst [vmem:[#allocation8] sm:$0xff] %v142
    // Predicated region
    $region34: #{tpu_custom_call.1} parent=1 // pred_check
      _
    $region35: #{tpu_custom_call.1} parent=1 // pred_check_branch
      %146 = sbr.rel (0) target = $region37
    $region36: #{tpu_custom_call.1} parent=1 // pred_region
      %148 = vsyncadd [#allocation4], 0
      %s150 = sshll.u32 [#allocation8], 4
      %s151 = int_to_ptr.vmem [resolvable:$true] %s150
      %s152 = sshll.u32 %s5, 4
      %s153 = int_to_ptr.hbm [resolvable:$true] %s152
      %155 = dma.vmem_to_hbm [thread:$0]  %s151, 128, %s153, [#allocation4]
    $region37: #{tpu_custom_call.1} parent=1 // pred_fallthru
      _
    // Predicated region
    $region38: #{tpu_custom_call.1} parent=1 // pred_check
      _
    $region39: #{tpu_custom_call.1} parent=1 // pred_check_branch
      %157 = sbr.rel (0) target = $region41
    $region40: #{tpu_custom_call.1} parent=1 // pred_region
      %159 = dma.done [#allocation4], 128
    $region41: #{tpu_custom_call.1} parent=1 // pred_fallthru
      _
    %160 = vsyncpa [#allocation3], 1
    %161 = vsyncpa [#allocation6], 1
    %162 = vsyncpa [#allocation4], 1

</llo_original>
